<compile_context>
chip_gen: v5e
topology: v5e:2x2
jax: 0.10.0
libtpu: 0.0.40
codegen_flags: <defaults>
</compile_context>

<pallas_src>
import numpy as np
import jax
import jax.numpy as jnp
from jax.experimental import pallas as pl
from jax.experimental.pallas import tpu as pltpu

EPS = float(np.finfo(float).eps)     # matches the torch script's EPSILON
DEFAULT_TEMP = 1.0 / 10.0


# ----------------------------- fused kernel ----------------------------------
def _concrete_dropout_kernel(x_ref, keep_ref, o_ref):
    # (bm, tf) row-block of x times the (1, tf) gate row: pure VPU broadcast
    # multiply in x.dtype, fully mem-bound.
    o_ref[...] = x_ref[...] * keep_ref[...]


# ------------------------- generation-aware tiling ----------------------------
def _pick_tiles(b, f, dtype_bytes):
    """Pick (row_block, feature_block, vmem_limit) from the chip's VMEM size."""
    try:
        vmem_cap = pltpu.get_tpu_info().vmem_capacity_bytes
    except Exception:
        vmem_cap = 64 * 1024 * 1024          # conservative (v7x-sized) fallback
    budget = vmem_cap // 2                   # leave headroom for compiler scratch

    # Feature tile: full width when modest, else a lane-dense 2048-wide slice.
    tf = f if f <= 2048 else 2048

    # Row tile: 4 buffers (input + output, each double-buffered) must fit the
    # budget; cap individual blocks at ~8 MiB (the measured sweet spot).
    max_block_bytes = min(budget // 4, 8 * 1024 * 1024)
    bm = max(8, max_block_bytes // (tf * dtype_bytes))
    if bm >= b:
        bm = b                               # full batch in one block
    else:
        bm = max(8, (bm // 8) * 8)           # sublane-aligned partial blocks
    return int(bm), int(tf), int(budget)


# ------------------------------ wrapper ---------------------------------------
def concrete_dropout(x, logit_p, unif_noise=None, *, temp=DEFAULT_TEMP,
                     block_rows=None, block_cols=None):
    """ConcreteDropout forward.

    x:          (B, F) array.
    logit_p:    (F,) or (1, F) parameter.
    unif_noise: None -> eval mode (uniform fixed at 0.5); else (F,)/(1,F)
                uniforms for training mode (same semantics as
                torch.rand_like(self.logit_p)).
    block_rows / block_cols: optional tile overrides (testing / tuning).
    Returns (x * (1 - approx_output), 1 - dropout_p) like the torch module.
    """
    assert x.ndim == 2, "expected x as (batch, features)"
    b, f = x.shape
    lp_shape = jnp.shape(logit_p)

    # --- tiny (1, F) gate math, done once in the wrapper (f32) --------------
    logit_row = jnp.asarray(logit_p, jnp.float32).reshape(1, f)
    if unif_noise is None:
        unif_row = jnp.full((1, f), 0.5, jnp.float32)          # eval branch
    else:
        unif_row = jnp.asarray(unif_noise, jnp.float32).reshape(1, f)
    dropout_p = jax.nn.sigmoid(logit_row)
    approx = (jnp.log(dropout_p + EPS) - jnp.log(1.0 - dropout_p + EPS)
              + jnp.log(unif_row + EPS) - jnp.log(1.0 - unif_row + EPS))
    keep = 1.0 - jax.nn.sigmoid(approx * (1.0 / float(temp)))
    retain_p = 1.0 - dropout_p                                  # second output
    keep_row = keep.astype(x.dtype)     # bf16-native multiply on v6e/v7x

    # --- block sizing --------------------------------------------------------
    dtype_bytes = jnp.dtype(x.dtype).itemsize
    bm, tf, vmem_budget = _pick_tiles(b, f, dtype_bytes)
    if block_rows is not None:
        bm = min(int(block_rows), b)
    if block_cols is not None:
        tf = min(int(block_cols), f)

    grid = (pl.cdiv(b, bm), pl.cdiv(f, tf))

    out = pl.pallas_call(
        _concrete_dropout_kernel,
        out_shape=jax.ShapeDtypeStruct((b, f), x.dtype),
        grid_spec=pltpu.PrefetchScalarGridSpec(
            num_scalar_prefetch=0,
            grid=grid,
            in_specs=[pl.BlockSpec((bm, tf), lambda i, j: (i, j)),
                      pl.BlockSpec((1, tf), lambda i, j: (0, j))],
            out_specs=pl.BlockSpec((bm, tf), lambda i, j: (i, j))),
        compiler_params=pltpu.CompilerParams(
            # no cross-step carried state -> both axes parallel (v7x megacore)
            dimension_semantics=("parallel", "parallel"),
            vmem_limit_bytes=vmem_budget),
    )(x, keep_row)
    return out, retain_p.reshape(lp_shape)


# --------------------------- pure-JAX reference -------------------------------
def concrete_dropout_ref(x, logit_p, unif_noise, temp=DEFAULT_TEMP):
    logit_p = jnp.asarray(logit_p, jnp.float32).reshape(1, -1)
    unif_noise = jnp.asarray(unif_noise, jnp.float32).reshape(1, -1)
    dropout_p = jax.nn.sigmoid(logit_p)
    approx = (jnp.log(dropout_p + EPS) - jnp.log(1.0 - dropout_p + EPS)
              + jnp.log(unif_noise + EPS) - jnp.log(1.0 - unif_noise + EPS))
    approx_output = jax.nn.sigmoid(approx / temp)
    return x * (1.0 - approx_output), 1.0 - dropout_p


# ------------------------------------ main ------------------------------------
if __name__ == "__main__":
    key = jax.random.PRNGKey(0)
    kx, kp, ku, kx2, kp2 = jax.random.split(key, 5)

    # --- test 1: eval mode (torch's `self.training == False` branch) ---------
    B, F = 16, 128
    x = jax.random.normal(kx, (B, F), jnp.float32)
    logit_p = 0.5 * jax.random.normal(kp, (F,), jnp.float32)

    fwd_eval = jax.jit(lambda xx, lp: concrete_dropout(xx, lp))
    out, pw = fwd_eval(x, logit_p)
    jax.block_until_ready((out, pw))

    unif_eval = jnp.full((1, F), 0.5, jnp.float32)
    out_ref, pw_ref = concrete_dropout_ref(x, logit_p, unif_eval)
    np.testing.assert_allclose(np.asarray(out), np.asarray(out_ref),
                               rtol=1e-5, atol=1e-5)
    np.testing.assert_allclose(np.asarray(pw), np.asarray(pw_ref).reshape(-1),
                               rtol=1e-6, atol=1e-6)

    # --- test 2: training mode (uniform noise sampled like rand_like(logit_p))
    unif_train = jax.random.uniform(ku, (F,), jnp.float32, 1e-3, 1.0 - 1e-3)
    fwd_train = jax.jit(lambda xx, lp, u: concrete_dropout(xx, lp, u))
    out_t, pw_t = fwd_train(x, logit_p, unif_train)
    jax.block_until_ready((out_t, pw_t))
    out_t_ref, pw_t_ref = concrete_dropout_ref(x, logit_p, unif_train)
    np.testing.assert_allclose(np.asarray(out_t), np.asarray(out_t_ref),
                               rtol=1e-5, atol=1e-5)
    np.testing.assert_allclose(np.asarray(pw_t),
                               np.asarray(pw_t_ref).reshape(-1),
                               rtol=1e-6, atol=1e-6)

    # --- test 3: multi-block 2-D grid (forces the tiled / parallel path) -----
    B2, F2 = 1024, 256
    x2 = jax.random.normal(kx2, (B2, F2), jnp.float32)
    logit_p2 = 0.3 * jax.random.normal(kp2, (F2,), jnp.float32)
    fwd_tiled = jax.jit(lambda xx, lp: concrete_dropout(
        xx, lp, block_rows=256, block_cols=128))
    out2, pw2 = fwd_tiled(x2, logit_p2)
    jax.block_until_ready((out2, pw2))
    out2_ref, pw2_ref = concrete_dropout_ref(
        x2, logit_p2, jnp.full((1, F2), 0.5, jnp.float32))
    np.testing.assert_allclose(np.asarray(out2), np.asarray(out2_ref),
                               rtol=1e-5, atol=1e-5)
    np.testing.assert_allclose(np.asarray(pw2),
                               np.asarray(pw2_ref).reshape(-1),
                               rtol=1e-6, atol=1e-6)

    # --- test 4: auto (generation-aware) block sizing on the same data -------
    out3, pw3 = jax.jit(lambda xx, lp: concrete_dropout(xx, lp))(x2, logit_p2)
    jax.block_until_ready((out3, pw3))
    np.testing.assert_allclose(np.asarray(out3), np.asarray(out2_ref),
                               rtol=1e-5, atol=1e-5)

    assert out.shape == (B, F) and pw.shape == (F,)
    print("KERNEL_OK")
</pallas_src>

<mosaic_0001>
module attributes {stable_mosaic.version = 11 : i64} {
  func.func @_concrete_dropout_kernel(%arg0: i32, %arg1: i32, %arg2: memref<16x128xf32, #tpu.memory_space<vmem>>, %arg3: memref<1x128xf32, #tpu.memory_space<vmem>>, %arg4: memref<16x128xf32, #tpu.memory_space<vmem>>) attributes {dimension_semantics = [#tpu.dimension_semantics<parallel>, #tpu.dimension_semantics<parallel>], iteration_bounds = array<i64: 1, 1>, scalar_prefetch = 0 : i64, scratch_operands = 0 : i64, tpu.core_type = #tpu.core_type<tc>, window_params = [{transform_indices = @transform_0, window_bounds = array<i64: 16, 128>}, {transform_indices = @transform_1, window_bounds = array<i64: 1, 128>}, {transform_indices = @transform_2, window_bounds = array<i64: 16, 128>}]} {
    %c0 = arith.constant 0 : index
    %c0_0 = arith.constant 0 : index
    %0 = vector.load %arg2[%c0, %c0_0] : memref<16x128xf32, #tpu.memory_space<vmem>>, vector<16x128xf32>
    %c0_1 = arith.constant 0 : index
    %c0_2 = arith.constant 0 : index
    %1 = vector.load %arg3[%c0_1, %c0_2] : memref<1x128xf32, #tpu.memory_space<vmem>>, vector<1x128xf32>
    %2 = vector.broadcast %1 : vector<1x128xf32> to vector<16x128xf32>
    %3 = arith.mulf %0, %2 : vector<16x128xf32>
    %c0_3 = arith.constant 0 : index
    %c0_4 = arith.constant 0 : index
    %4 = vector.load %arg4[%c0_3, %c0_4] : memref<16x128xf32, #tpu.memory_space<vmem>>, vector<16x128xf32>
    tpu.vector_store %arg4[%c0_3, %c0_4], %3 {strides = array<i32>} : memref<16x128xf32, #tpu.memory_space<vmem>>, vector<16x128xf32>,
    return
  }
  func.func @transform_0(%arg0: i32, %arg1: i32) -> (i32, i32) {
    %c0_i32 = arith.constant 0 : i32
    return %arg0, %arg1 : i32, i32
  }
  func.func @transform_1(%arg0: i32, %arg1: i32) -> (i32, i32) {
    %c0_i32 = arith.constant 0 : i32
    %c0_i32_0 = arith.constant 0 : i32
    return %c0_i32, %arg1 : i32, i32
  }
  func.func @transform_2(%arg0: i32, %arg1: i32) -> (i32, i32) {
    %c0_i32 = arith.constant 0 : i32
    return %arg0, %arg1 : i32, i32
  }
}

</mosaic_0001>

<llo_original>
// kernel: _lambda_.1
$region0: #{_lambda_.1}
  #allocation0 [shape = 'u32[]', space=smem, size = 0x4, offset = 0x4, fixed_abs, tag = 'smem constant byte address 0x4 - core index']
  #allocation1 [shape = 'u32[72,128]{1,0:T(1,128)}', space=vmem, size = 0x9000, scoped, tag = 'internal scratch']
  %s0 = inlined_call_operand.hbm [shape: f32[16,128], index: 0, kind: input, shape index: {}]
  %s1 = inlined_call_operand.vmem [shape: f32[1,128], index: 1, kind: input, shape index: {}]
  %s2 = inlined_call_operand.hbm [shape: f32[16,128], index: 2, kind: output, shape index: {}]
  %s3 = sld [smem:[#allocation0]]
  $region22: #{_lambda_.1} parent=0
    _
  %s5 = ssub.s32 1, %s3
  %s6 = scalar_select 0, %s5, %s3
  $region1: #{_lambda_.1} parent=0
    #allocation2 [shape = 'u8[8192]{0}', space=vmem, size = 0x2000, scoped, tag = 'input window, operand 0, single buffered']
    #allocation3 [shape = 's32[1]{0}', space=sflag, size = 0x4, scoped, tag = 'scoped memory for _lambda_.1']
    #allocation4 [shape = 's32[1]{0}', space=sflag, size = 0x4, scoped, tag = 'scoped memory for _lambda_.1']
    #allocation5 [shape = 'u8[8192]{0}', space=vmem, size = 0x2000, scoped, tag = 'output window, operand 0, single buffered']
    %7 = vsyncpa [#allocation3], 0
    %8 = vsyncpa [#allocation4], 0
    // Predicated region
    $region2: #{_lambda_.1} parent=1 // pred_check
      _
    $region3: #{_lambda_.1} parent=1 // pred_check_branch
      %10 = sbr.rel (0) target = $region5
    $region4: #{_lambda_.1} parent=1 // pred_region
      %12 = vsyncadd [#allocation3], 0
      %s13 = sshll.u32 %s0, 4
      %s14 = int_to_ptr.hbm [resolvable:$true] %s13
      %s15 = sshll.u32 [#allocation2], 4
      %s16 = int_to_ptr.vmem [resolvable:$true] %s15
      %21 = dma.hbm_to_vmem [thread:$0]  %s14, 256, %s16, [#allocation3], 128, 128, 8
    $region5: #{_lambda_.1} parent=1 // pred_fallthru
      _
    // Predicated region
    $region6: #{_lambda_.1} parent=1 // pred_check
      _
    $region7: #{_lambda_.1} parent=1 // pred_check_branch
      %23 = sbr.rel (0) target = $region9
    $region8: #{_lambda_.1} parent=1 // pred_region
      _
    $region9: #{_lambda_.1} parent=1 // pred_fallthru
      _
    // Predicated region
    $region10: #{_lambda_.1} parent=1 // pred_check
      _
    $region11: #{_lambda_.1} parent=1 // pred_check_branch
      %25 = sbr.rel (0) target = $region13
    $region12: #{_lambda_.1} parent=1 // pred_region
      %27 = dma.done [#allocation3], 256
    $region13: #{_lambda_.1} parent=1 // pred_fallthru
      _
    %v28 = vld [vmem:[#allocation2] sm:$0xff]
    %v29 = vld [vmem:[#allocation2 + $0x8] sm:$0xff]
    %v30 = vld [vmem:[%s1] sm:$0x1]
    %v32 = vperm.slane %v30, 0
    %v34 = vmul.f32 %v28, %v32
    %v35 = vmul.f32 %v29, %v32
    %36 = vst [vmem:[#allocation5] sm:$0xff] %v34
    %37 = vst [vmem:[#allocation5 + $0x8] sm:$0xff] %v35
    // Predicated region
    $region14: #{_lambda_.1} parent=1 // pred_check
      _
    $region15: #{_lambda_.1} parent=1 // pred_check_branch
      %39 = sbr.rel (0) target = $region17
    $region16: #{_lambda_.1} parent=1 // pred_region
      %41 = vsyncadd [#allocation4], 0
      %s42 = sshll.u32 [#allocation5], 4
      %s43 = int_to_ptr.vmem [resolvable:$true] %s42
      %s44 = sshll.u32 %s2, 4
      %s45 = int_to_ptr.hbm [resolvable:$true] %s44
      %50 = dma.vmem_to_hbm [thread:$0]  %s43, 256, %s45, [#allocation4], 128, 128, 8
    $region17: #{_lambda_.1} parent=1 // pred_fallthru
      _
    // Predicated region
    $region18: #{_lambda_.1} parent=1 // pred_check
      _
    $region19: #{_lambda_.1} parent=1 // pred_check_branch
      %52 = sbr.rel (0) target = $region21
    $region20: #{_lambda_.1} parent=1 // pred_region
      %54 = dma.done [#allocation4], 256
    $region21: #{_lambda_.1} parent=1 // pred_fallthru
      _
    %55 = vsyncpa [#allocation3], 1
    %56 = vsyncpa [#allocation4], 1

</llo_original>
